<compile_context>
chip_gen: v7x
topology: tpu7x:2x2x1
jax: 0.10.0
libtpu: 0.0.40
codegen_flags: <defaults>
</compile_context>

<pallas_src>
import functools
import math

import jax
import jax.numpy as jnp
from jax import lax
from jax.experimental import pallas as pl
from jax.experimental.pallas import tpu as pltpu


# ----------------------------------------------------------------------------
# Tiling helpers
# ----------------------------------------------------------------------------

def _pick_tile(dim, cap, granule):
    """Largest tile <= cap that is a multiple of `granule` and divides dim,
    falling back to the full dim (a full-extent block is always legal)."""
    if dim <= cap:
        return dim
    t = (cap // granule) * granule
    while t >= granule:
        if dim % t == 0:
            return t
        t -= granule
    return dim


def _attn_tiling(H, Tq, Tk, dh, budget_bytes, tq_cap=128):
    """Pick (head_chunk Hc, query tile tq) so the per-step attention block
    footprint (Q + K + V + att_w + out) fits `budget_bytes` (single buffer;
    Pallas double-buffers on top).  Hc is a divisor of H, and either Hc == H
    or Hc*dh is a multiple of 128 so the merged out block stays lane-legal."""
    bpe = 2  # bf16 operands

    head_opts = [h for h in range(H, 0, -1)
                 if H % h == 0 and (h == H or (h * dh) % 128 == 0)]

    tq_opts = []
    t = _pick_tile(Tq, tq_cap, 8)
    while True:
        tq_opts.append(t)
        if t <= 8:
            break
        nt = _pick_tile(Tq, max(8, t // 2), 8)
        if nt >= t:
            break
        t = nt

    def footprint(hc, tq):
        return (hc * tq * dh * bpe            # Q block
                + 2 * hc * Tk * dh * bpe      # K + V blocks
                + hc * tq * Tk * 4            # att_w block (f32)
                + tq * hc * dh * bpe)         # merged out block (bf16)

    for tq in tq_opts:                         # prefer big tq, then big Hc
        for hc in head_opts:
            if footprint(hc, tq) <= budget_bytes:
                return hc, tq
    return head_opts[-1], tq_opts[-1]


# ----------------------------------------------------------------------------
# Tiled linear:  y = x @ W + b      (W stored as (Din, Dout) == torch weight.T)
# bf16 MXU operands, f32 accumulation, configurable output dtype.
# ----------------------------------------------------------------------------

def _linear_kernel(x_ref, w_ref, b_ref, o_ref, acc_ref):
    @pl.when(pl.program_id(2) == 0)
    def _():
        acc_ref[...] = jnp.zeros_like(acc_ref)

    acc_ref[...] += jnp.dot(x_ref[...], w_ref[...],
                            preferred_element_type=jnp.float32)

    @pl.when(pl.program_id(2) == pl.num_programs(2) - 1)
    def _():
        o_ref[...] = (acc_ref[...] + b_ref[...]).astype(o_ref.dtype)


def linear(x2d, w, b, *, out_dtype=jnp.float32,
           tm_cap=512, tn_cap=512, tk_cap=512):
    """x2d: (N, Din), w: (Din, Dout), b: (Dout,) -> (N, Dout) in out_dtype."""
    N, Din = x2d.shape
    Dout = w.shape[1]
    x2d = x2d.astype(jnp.bfloat16)            # bf16 operands for the MXU
    w = w.astype(jnp.bfloat16)
    b = b.astype(jnp.float32).reshape(1, Dout)
    tm = _pick_tile(N, tm_cap, 8)
    tn = _pick_tile(Dout, tn_cap, 128)
    tk = _pick_tile(Din, tk_cap, 128)
    grid = (N // tm, Dout // tn, Din // tk)
    return pl.pallas_call(
        _linear_kernel,
        out_shape=jax.ShapeDtypeStruct((N, Dout), out_dtype),
        grid=grid,
        in_specs=[
            pl.BlockSpec((tm, tk), lambda i, j, k: (i, k)),
            pl.BlockSpec((tk, tn), lambda i, j, k: (k, j)),
            pl.BlockSpec((1, tn), lambda i, j, k: (0, j)),
        ],
        out_specs=pl.BlockSpec((tm, tn), lambda i, j, k: (i, j)),
        scratch_shapes=[pltpu.VMEM((tm, tn), jnp.float32)],
        compiler_params=pltpu.CompilerParams(
            dimension_semantics=("parallel", "parallel", "arbitrary")),
    )(x2d, w, b)


# ----------------------------------------------------------------------------
# Fused grouped attention: scores (scale pre-folded into Wq) + mask bias +
# softmax + P@V.  One grid step = (batch b, head-group g, query tile qi).
# Output is written head-merged (tq, Hc*dh) -> the wrapper reshape is free.
# ----------------------------------------------------------------------------

def _attn_kernel(*refs, dh, has_mask):
    if has_mask:
        q_ref, k_ref, v_ref, m_ref, att_ref, out_ref = refs
    else:
        q_ref, k_ref, v_ref, att_ref, out_ref = refs
        m_ref = None

    q = q_ref[...]                                    # (Hc, tq, dh) bf16 (pre-scaled)
    k = k_ref[...]                                    # (Hc, Tk, dh) bf16
    # Batched QK^T over the head axis, contracting dh, f32 accumulation.
    # (Note: dh < 128 underfills the 256x256 MXU — inherent to the config.)
    s = jnp.einsum('htd,hsd->hts', q, k,
                   preferred_element_type=jnp.float32)        # (Hc, tq, Tk)
    if has_mask:
        # mask block is (mh_blk, mq_blk, Tk) with 1-sized dims broadcasting.
        s = s + m_ref[...].astype(jnp.float32) * (-1e9)

    m = jnp.max(s, axis=-1, keepdims=True)
    p = jnp.exp(s - m)
    w = p * pl.reciprocal(jnp.sum(p, axis=-1, keepdims=True), approx=True)
    att_ref[...] = w.astype(att_ref.dtype)

    o = jnp.einsum('hts,hsd->htd', w.astype(v_ref.dtype), v_ref[...],
                   preferred_element_type=jnp.float32)        # (Hc, tq, dh)
    hc = o.shape[0]
    for h in range(hc):                               # direct lane-slice stores; no concat
        out_ref[:, h * dh:(h + 1) * dh] = o[h].astype(out_ref.dtype)


def grouped_attention(Qh, Kh, Vh, mask, *,
                      att_dtype=jnp.float32, out_dtype=jnp.bfloat16,
                      vmem_budget_bytes=12 * 1024 * 1024):
    """Qh/Kh/Vh: (B, H, Tq, dh) / (B, H, Tk, dh) — Q already scaled by 1/sqrt(dh).
    mask: None or (1|B, 1|H, 1|Tq, Tk).
    Returns att_w (B, H, Tq, Tk) and head-merged out (B, Tq, H*dh)."""
    B, H, Tq, dh = Qh.shape
    Tk = Kh.shape[2]
    Qh = Qh.astype(jnp.bfloat16)
    Kh = Kh.astype(jnp.bfloat16)
    Vh = Vh.astype(jnp.bfloat16)

    Hc, tq = _attn_tiling(H, Tq, Tk, dh, vmem_budget_bytes)
    Hg = H // Hc
    nq = Tq // tq

    in_specs = [
        pl.BlockSpec((None, Hc, tq, dh), lambda b, g, qi: (b, g, qi, 0)),
        pl.BlockSpec((None, Hc, Tk, dh), lambda b, g, qi: (b, g, 0, 0)),
        pl.BlockSpec((None, Hc, Tk, dh), lambda b, g, qi: (b, g, 0, 0)),
    ]
    args = [Qh, Kh, Vh]

    has_mask = mask is not None
    if has_mask:
        mb, mh, mq, mk = mask.shape
        # NOTE: faithful to the PyTorch pad() quirk; for cross-attention with
        # Tq != Tk and different paddings this assert can fire (see module docs).
        assert mb in (1, B) and mh in (1, H) and mq in (1, Tq) and mk == Tk
        mask = mask.astype(jnp.bfloat16)      # 0/1 exact; halves mask DMA
        mh_blk = Hc if mh == H else 1
        mq_blk = tq if mq == Tq else 1
        # Broadcast over batch / head / query folded into the index_map
        # (no jnp.broadcast_to materialization, no repeated DMA of copies).
        mspec = pl.BlockSpec(
            (None, mh_blk, mq_blk, Tk),
            lambda b, g, qi: (b if mb != 1 else 0,
                              g if mh != 1 else 0,
                              qi if mq != 1 else 0,
                              0))
        in_specs.append(mspec)
        args.append(mask)

    kernel = functools.partial(_attn_kernel, dh=dh, has_mask=has_mask)

    att_w, out = pl.pallas_call(
        kernel,
        out_shape=(jax.ShapeDtypeStruct((B, H, Tq, Tk), att_dtype),
                   jax.ShapeDtypeStruct((B, Tq, H * dh), out_dtype)),
        grid=(B, Hg, nq),
        in_specs=in_specs,
        out_specs=(pl.BlockSpec((None, Hc, tq, Tk), lambda b, g, qi: (b, g, qi, 0)),
                   pl.BlockSpec((None, tq, Hc * dh), lambda b, g, qi: (b, qi, g))),
        compiler_params=pltpu.CompilerParams(
            dimension_semantics=("parallel", "parallel", "parallel"),
            vmem_limit_bytes=32 * 1024 * 1024),
    )(*args)
    return att_w, out


# ----------------------------------------------------------------------------
# Plain-JAX glue: padding / mask plumbing (identical to the PyTorch pad())
# ----------------------------------------------------------------------------

def pad_qkv(q, k, v, mask, chunk_size):
    B, Tq, _ = q.shape
    Tk = k.shape[1]
    overflow_Q = Tq % chunk_size
    overflow_KV = Tk % chunk_size
    padding_Q = chunk_size - overflow_Q if overflow_Q else 0
    padding_KV = chunk_size - overflow_KV if overflow_KV else 0
    if padding_Q:
        q = jnp.pad(q, ((0, 0), (0, padding_Q), (0, 0)))
    if padding_KV:
        k = jnp.pad(k, ((0, 0), (0, padding_KV), (0, 0)))
        v = jnp.pad(v, ((0, 0), (0, padding_KV), (0, 0)))
    if mask is not None:
        mask = mask.astype(jnp.float32)
        if mask.shape[2] == 1:
            mask = jnp.pad(mask, ((0, 0), (0, 0), (0, 0), (0, padding_KV)),
                           constant_values=1.0)
        else:  # mirrors F.pad(mask, (0, padding_Q, 0, padding_KV), value=1)
            mask = jnp.pad(mask, ((0, 0), (0, 0), (0, padding_KV), (0, padding_Q)),
                           constant_values=1.0)
    elif padding_KV:
        mask = jnp.pad(jnp.zeros((B, 1, 1, Tk), jnp.float32),
                       ((0, 0), (0, 0), (0, 0), (0, padding_KV)),
                       constant_values=1.0)
    return q, k, v, mask, padding_Q


def grouped_mhsa_forward(params, query, key, value, mask=None):
    """Returns (out (B, T, D) f32, att_w (B, H, ceil(T/G), ceil(T/G)) f32)."""
    B, Tq_in, D = query.shape
    H = params["num_heads"]
    G = params["group_size"]
    dh = G * D // H

    # Projections in bf16 -> the attention kernel DMAs bf16 q/k/v from HBM.
    # 1/sqrt(dh) is pre-folded into the Q weights/bias (constant fold).
    if (query is key) and (key is value):
        qkv = linear(query.reshape(B * Tq_in, D), params["Wqkv"], params["bqkv"],
                     out_dtype=jnp.bfloat16).reshape(B, Tq_in, 3 * D)
        q, k, v = qkv[..., :D], qkv[..., D:2 * D], qkv[..., 2 * D:]
    else:
        Tk_in = key.shape[1]
        q = linear(query.reshape(B * Tq_in, D), params["Wq_s"], params["bq_s"],
                   out_dtype=jnp.bfloat16).reshape(B, Tq_in, D)
        k = linear(key.reshape(B * Tk_in, D), params["Wk"], params["bk"],
                   out_dtype=jnp.bfloat16).reshape(B, Tk_in, D)
        v = linear(value.reshape(B * Tk_in, D), params["Wv"], params["bv"],
                   out_dtype=jnp.bfloat16).reshape(B, Tk_in, D)

    q, k, v, mask, padding_Q = pad_qkv(q, k, v, mask, G)
    Tqp = q.shape[1]

    def split_heads(x):
        return x.reshape(B, -1, H, dh).transpose(0, 2, 1, 3)

    Qh, Kh, Vh = map(split_heads, (q, k, v))

    if mask is not None:
        mask = mask[:, :, ::G, ::G]

    att_w, out_m = grouped_attention(Qh, Kh, Vh, mask)        # Pallas (fused)

    out = out_m.reshape(B, Tqp, D)                            # free head-merge reshape
    if padding_Q:
        out = out[:, :Tqp - padding_Q]
    Tout = out.shape[1]
    out = linear(out.reshape(B * Tout, D), params["Wo"], params["bo"],
                 out_dtype=jnp.float32).reshape(B, Tout, D)
    return out, att_w


# ----------------------------------------------------------------------------
# Pure-jnp reference (mirrors the PyTorch forward). compute_dtype=bf16 applies
# the same operand casts as the kernels (for a tight check); f32 is the exact
# PyTorch math (loose sanity bound = expected bf16 quantization).
# ----------------------------------------------------------------------------

def reference_forward(params, query, key, value, mask=None,
                      compute_dtype=jnp.float32):
    B, _, D = query.shape
    H = params["num_heads"]
    G = params["group_size"]
    dh = G * D // H
    cd = compute_dtype

    def lin(x, w, b):
        return jnp.dot(x.astype(cd), w.astype(cd),
                       preferred_element_type=jnp.float32) + b

    q = lin(query, params["Wq"], params["bq"])
    k = lin(key, params["Wk"], params["bk"])
    v = lin(value, params["Wv"], params["bv"])
    q, k, v, m, padding = pad_qkv(q, k, v, mask, G)

    heads = lambda x: x.astype(cd).reshape(B, -1, H, dh).transpose(0, 2, 1, 3)
    qh, kh, vh = map(heads, (q, k, v))

    s = jnp.einsum("bhtd,bhsd->bhts", qh, kh,
                   preferred_element_type=jnp.float32) / dh ** 0.5
    if m is not None:
        m = m[:, :, ::G, ::G]
        s = s + m.astype(jnp.float32) * -1e9
    w = jax.nn.softmax(s, axis=-1)
    o = jnp.einsum("bhts,bhsd->bhtd", w.astype(cd), vh,
                   preferred_element_type=jnp.float32)
    o = o.transpose(0, 2, 1, 3).reshape(B, -1, D)
    o = o[:, :o.shape[1] - padding]
    return lin(o, params["Wo"], params["bo"]), w


# ----------------------------------------------------------------------------
# Deterministic parameters + self-test
# ----------------------------------------------------------------------------

def init_params(key, dim_model, num_heads, group_size):
    ks = jax.random.split(key, 8)
    scale = 1.0 / math.sqrt(dim_model)
    w = lambda kk: jax.random.normal(kk, (dim_model, dim_model), jnp.float32) * scale
    b = lambda kk: jax.random.normal(kk, (dim_model,), jnp.float32) * 0.01
    Wq, Wk, Wv, Wo = w(ks[0]), w(ks[1]), w(ks[2]), w(ks[3])
    bq, bk, bv, bo = b(ks[4]), b(ks[5]), b(ks[6]), b(ks[7])
    dh = group_size * dim_model // num_heads
    sm = 1.0 / math.sqrt(dh)        # folded into the Q projection (exact: power of 2 here)
    return {
        "num_heads": num_heads,
        "group_size": group_size,
        # raw weights (reference / cross-attention K/V/O paths)
        "Wq": Wq, "bq": bq, "Wk": Wk, "bk": bk, "Wv": Wv, "bv": bv,
        "Wo": Wo, "bo": bo,
        # scale-folded Q weights and fused QKV weight for the self-attention fast path
        "Wq_s": Wq * sm, "bq_s": bq * sm,
        "Wqkv": jnp.concatenate([Wq * sm, Wk, Wv], axis=1),
        "bqkv": jnp.concatenate([bq * sm, bk, bv]),
    }


def _check(params, x, mask, B, H, G, name):
    out, att_w = grouped_mhsa_forward(params, x, x, x, mask=mask)
    out = jax.block_until_ready(out)
    att_w = jax.block_until_ready(att_w)

    T = x.shape[1]
    Tg = -(-T // G)  # padded length / G
    assert out.shape == (B, T, x.shape[2]), name
    assert att_w.shape == (B, H, Tg, Tg), name

    # Tight check against a reference with the same bf16 operand casts.
    ref_out, ref_w = reference_forward(params, x, x, x, mask=mask,
                                       compute_dtype=jnp.bfloat16)
    assert bool(jnp.allclose(out, ref_out, rtol=1e-2, atol=1e-2)), name
    assert bool(jnp.allclose(att_w, ref_w, rtol=1e-2, atol=1e-2)), name

    # Loose sanity check against the exact-f32 PyTorch math (bf16 quantization bound).
    f32_out, f32_w = reference_forward(params, x, x, x, mask=mask,
                                       compute_dtype=jnp.float32)
    assert bool(jnp.allclose(out, f32_out, rtol=1e-1, atol=1e-1)), name
    assert bool(jnp.allclose(att_w, f32_w, rtol=1e-1, atol=1e-1)), name


if __name__ == "__main__":
    B, D, H, G = 2, 32, 4, 2

    root = jax.random.PRNGKey(0)
    k_params, k_x1, k_x2 = jax.random.split(root, 3)
    params = init_params(k_params, D, H, G)

    # Case 1: T divisible by group_size, no mask  -> unmasked fused kernel.
    T1 = 8
    x1 = jax.random.normal(k_x1, (B, T1, D), jnp.float32)
    _check(params, x1, None, B, H, G, "case1")

    # Case 2: T not divisible by group_size -> internal padding mask path.
    T2 = 7
    x2 = jax.random.normal(k_x2, (B, T2, D), jnp.float32)
    _check(params, x2, None, B, H, G, "case2")

    # Case 3: user-provided (1, 1, T, T) causal mask -> masked kernel, mq == T/G.
    causal_mask = jnp.triu(jnp.ones((1, 1, T1, T1), jnp.float32), k=1)
    _check(params, x1, causal_mask, B, H, G, "case3")

    # TODO(synk): for very long sequences add key-axis tiling with an online
    # softmax (full-key rows are kept per query tile because att_w must be
    # materialized, which already sets an O(T^2) HBM floor).
    print("KERNEL_OK")
</pallas_src>

<mosaic_0001>
module attributes {stable_mosaic.version = 11 : i64} {
  func.func @_linear_kernel(%arg0: i32, %arg1: i32, %arg2: i32, %arg3: memref<16x32xbf16, #tpu.memory_space<vmem>>, %arg4: memref<32x96xbf16, #tpu.memory_space<vmem>>, %arg5: memref<1x96xf32, #tpu.memory_space<vmem>>, %arg6: memref<16x96xbf16, #tpu.memory_space<vmem>>, %arg7: memref<16x96xf32, #tpu.memory_space<vmem>>) attributes {dimension_semantics = [#tpu.dimension_semantics<parallel>, #tpu.dimension_semantics<parallel>, #tpu.dimension_semantics<arbitrary>], iteration_bounds = array<i64: 1, 1, 1>, scalar_prefetch = 0 : i64, scratch_operands = 1 : i64, tpu.core_type = #tpu.core_type<tc>, window_params = [{transform_indices = @transform_0, window_bounds = array<i64: 16, 32>}, {transform_indices = @transform_1, window_bounds = array<i64: 32, 96>}, {transform_indices = @transform_2, window_bounds = array<i64: 1, 96>}, {transform_indices = @transform_3, window_bounds = array<i64: 16, 96>}]} {
    %c0_i32 = arith.constant 0 : i32
    %0 = arith.cmpi eq, %arg2, %c0_i32 : i32
    %1 = arith.extui %0 : i1 to i32
    %c0_i32_0 = arith.constant 0 : i32
    %2 = arith.cmpi ne, %1, %c0_i32_0 : i32
    scf.if %2 {
      %cst_10 = arith.constant 0.000000e+00 : f32
      %12 = vector.broadcast %cst_10 : f32 to vector<16x96xf32>
      %c0_11 = arith.constant 0 : index
      %c0_12 = arith.constant 0 : index
      %13 = vector.load %arg7[%c0_11, %c0_12] : memref<16x96xf32, #tpu.memory_space<vmem>>, vector<16x96xf32>
      tpu.vector_store %arg7[%c0_11, %c0_12], %12 {strides = array<i32>} : memref<16x96xf32, #tpu.memory_space<vmem>>, vector<16x96xf32>,
    } else {
    }
    %c0 = arith.constant 0 : index
    %c0_1 = arith.constant 0 : index
    %3 = vector.load %arg7[%c0, %c0_1] : memref<16x96xf32, #tpu.memory_space<vmem>>, vector<16x96xf32>
    %c0_2 = arith.constant 0 : index
    %c0_3 = arith.constant 0 : index
    %4 = vector.load %arg3[%c0_2, %c0_3] : memref<16x32xbf16, #tpu.memory_space<vmem>>, vector<16x32xbf16>
    %c0_4 = arith.constant 0 : index
    %c0_5 = arith.constant 0 : index
    %5 = vector.load %arg4[%c0_4, %c0_5] : memref<32x96xbf16, #tpu.memory_space<vmem>>, vector<32x96xbf16>
    %cst = arith.constant dense<0.000000e+00> : vector<16x96xf32>
    %6 = tpu.matmul %4, %5, %cst {dimension_numbers = #tpu.dot_dimension_numbers<[1], [0], [0], [1], [0, 0, 1, 1], [], []>} : vector<16x32xbf16>, vector<32x96xbf16>, vector<16x96xf32> -> vector<16x96xf32>
    %7 = arith.addf %3, %6 : vector<16x96xf32>
    %c0_6 = arith.constant 0 : index
    %c0_7 = arith.constant 0 : index
    %8 = vector.load %arg7[%c0_6, %c0_7] : memref<16x96xf32, #tpu.memory_space<vmem>>, vector<16x96xf32>
    tpu.vector_store %arg7[%c0_6, %c0_7], %7 {strides = array<i32>} : memref<16x96xf32, #tpu.memory_space<vmem>>, vector<16x96xf32>,
    %c0_i32_8 = arith.constant 0 : i32
    %9 = arith.cmpi eq, %arg2, %c0_i32_8 : i32
    %10 = arith.extui %9 : i1 to i32
    %c0_i32_9 = arith.constant 0 : i32
    %11 = arith.cmpi ne, %10, %c0_i32_9 : i32
    scf.if %11 {
      %c0_10 = arith.constant 0 : index
      %c0_11 = arith.constant 0 : index
      %12 = vector.load %arg7[%c0_10, %c0_11] : memref<16x96xf32, #tpu.memory_space<vmem>>, vector<16x96xf32>
      %c0_12 = arith.constant 0 : index
      %c0_13 = arith.constant 0 : index
      %13 = vector.load %arg5[%c0_12, %c0_13] : memref<1x96xf32, #tpu.memory_space<vmem>>, vector<1x96xf32>
      %14 = vector.broadcast %13 : vector<1x96xf32> to vector<16x96xf32>
      %15 = arith.addf %12, %14 : vector<16x96xf32>
      %16 = arith.truncf %15 : vector<16x96xf32> to vector<16x96xbf16>
      %c0_14 = arith.constant 0 : index
      %c0_15 = arith.constant 0 : index
      %17 = vector.load %arg6[%c0_14, %c0_15] : memref<16x96xbf16, #tpu.memory_space<vmem>>, vector<16x96xbf16>
      tpu.vector_store %arg6[%c0_14, %c0_15], %16 {strides = array<i32>} : memref<16x96xbf16, #tpu.memory_space<vmem>>, vector<16x96xbf16>,
    } else {
    }
    return
  }
  func.func @transform_0(%arg0: i32, %arg1: i32, %arg2: i32) -> (i32, i32) {
    %c0_i32 = arith.constant 0 : i32
    return %arg0, %arg2 : i32, i32
  }
  func.func @transform_1(%arg0: i32, %arg1: i32, %arg2: i32) -> (i32, i32) {
    %c0_i32 = arith.constant 0 : i32
    return %arg2, %arg1 : i32, i32
  }
  func.func @transform_2(%arg0: i32, %arg1: i32, %arg2: i32) -> (i32, i32) {
    %c0_i32 = arith.constant 0 : i32
    %c0_i32_0 = arith.constant 0 : i32
    return %c0_i32, %arg1 : i32, i32
  }
  func.func @transform_3(%arg0: i32, %arg1: i32, %arg2: i32) -> (i32, i32) {
    %c0_i32 = arith.constant 0 : i32
    return %arg0, %arg1 : i32, i32
  }
}

</mosaic_0001>

<llo_original>
// kernel: tpu_custom_call.1
$region0: #{tpu_custom_call.1}
  #allocation0 [shape = 'u32[]', space=smem, size = 0x4, offset = 0x4, fixed_abs, tag = 'smem constant byte address 0x4 - core index']
  #allocation1 [shape = 'u32[144,128]{1,0:T(1,128)}', space=vmem, size = 0x12000, scoped, tag = 'internal scratch']
  #allocation2 [shape = 'f32[16,96]{1,0:T(8,128)}', space=vmem, size = 0x2000, scoped, tag = 'scratch operand']
  %s0 = inlined_call_operand.hbm [shape: bf16[16,32], index: 0, kind: input, shape index: {}]
  %s1 = inlined_call_operand.hbm [shape: bf16[32,96], index: 1, kind: input, shape index: {}]
  %s2 = inlined_call_operand.vmem [shape: f32[1,96], index: 2, kind: input, shape index: {}]
  %s3 = inlined_call_operand.hbm [shape: bf16[16,96], index: 3, kind: output, shape index: {}]
  %s4 = sld [smem:[#allocation0]]
  $region38: #{tpu_custom_call.1} parent=0
    _
  %s6 = ssub.s32 1, %s4
  %s7 = scalar_select 0, %s6, %s4
  $region1: #{tpu_custom_call.1} parent=0
    #allocation3 [shape = 'u8[4096]{0}', space=vmem, size = 0x1000, scoped, tag = 'input window, operand 0, single buffered']
    #allocation4 [shape = 's32[1]{0}', space=sflag, size = 0x4, scoped, tag = 'scoped memory for tpu_custom_call.1']
    #allocation5 [shape = 's32[1]{0}', space=sflag, size = 0x4, scoped, tag = 'scoped memory for tpu_custom_call.1']
    #allocation6 [shape = 'u8[8192]{0}', space=vmem, size = 0x2000, scoped, tag = 'input window, operand 1, single buffered']
    #allocation7 [shape = 's32[1]{0}', space=sflag, size = 0x4, scoped, tag = 'scoped memory for tpu_custom_call.1']
    #allocation8 [shape = 'u8[4096]{0}', space=vmem, size = 0x1000, scoped, tag = 'output window, operand 0, single buffered']
    %8 = vsyncpa [#allocation4], 0
    %9 = vsyncpa [#allocation7], 0
    %10 = vsyncpa [#allocation5], 0
    // Predicated region
    $region2: #{tpu_custom_call.1} parent=1 // pred_check
      _
    $region3: #{tpu_custom_call.1} parent=1 // pred_check_branch
      %12 = sbr.rel (0) target = $region5
    $region4: #{tpu_custom_call.1} parent=1 // pred_region
      %s14 = ssub.s32 128, 128
      %15 = vsyncadd [#allocation4], %s14
      %s16 = sshll.u32 [#allocation3], 4
      %s17 = int_to_ptr.vmem [resolvable:$true] %s16
      %22 = dma.hbm_to_vmem [thread:$0]  %s0, 128, %s17, [#allocation4], 64, 64, 4
    $region5: #{tpu_custom_call.1} parent=1 // pred_fallthru
      _
    // Predicated region
    $region6: #{tpu_custom_call.1} parent=1 // pred_check
      _
    $region7: #{tpu_custom_call.1} parent=1 // pred_check_branch
      %24 = sbr.rel (0) target = $region9
    $region8: #{tpu_custom_call.1} parent=1 // pred_region
      %s26 = ssub.s32 256, 256
      %27 = vsyncadd [#allocation7], %s26
      %s28 = sshll.u32 [#allocation6], 4
      %s29 = int_to_ptr.vmem [resolvable:$true] %s28
      %34 = dma.hbm_to_vmem [thread:$0]  %s1, 256, %s29, [#allocation7], 64, 64, 4
    $region9: #{tpu_custom_call.1} parent=1 // pred_fallthru
      _
    // Predicated region
    $region10: #{tpu_custom_call.1} parent=1 // pred_check
      _
    $region11: #{tpu_custom_call.1} parent=1 // pred_check_branch
      %36 = sbr.rel (0) target = $region13
    $region12: #{tpu_custom_call.1} parent=1 // pred_region
      _
    $region13: #{tpu_custom_call.1} parent=1 // pred_fallthru
      _
    // Predicated region
    $region14: #{tpu_custom_call.1} parent=1 // pred_check
      _
    $region15: #{tpu_custom_call.1} parent=1 // pred_check_branch
      %38 = sbr.rel (0) target = $region17
    $region16: #{tpu_custom_call.1} parent=1 // pred_region
      %39 = dma.done [#allocation4], 128
    $region17: #{tpu_custom_call.1} parent=1 // pred_fallthru
      _
    // Predicated region
    $region18: #{tpu_custom_call.1} parent=1 // pred_check
      _
    $region19: #{tpu_custom_call.1} parent=1 // pred_check_branch
      %41 = sbr.rel (0) target = $region21
    $region20: #{tpu_custom_call.1} parent=1 // pred_region
      %42 = dma.done [#allocation7], 256
    $region21: #{tpu_custom_call.1} parent=1 // pred_fallthru
      _
    %p44 = scmp.eq.s32.totalorder 0, 0
    // Predicated region
    $region22: #{tpu_custom_call.1} parent=1 // pred_check
      %p45 = pneg %p44
    $region23: #{tpu_custom_call.1} parent=1 // pred_check_branch
      %47 = sbr.rel (%p45) target = $region25
    $region24: #{tpu_custom_call.1} parent=1 // pred_region
      %vm48 = vcmask 785408
      %49 = vst.msk [vmem:[#allocation2] sm:$0xff] %vm48, 0.0
      %50 = vst.msk [vmem:[#allocation2 + $0x8] sm:$0xff] %vm48, 0.0
    $region25: #{tpu_custom_call.1} parent=1 // pred_fallthru
      _
    %v51 = vld [vmem:[#allocation2] sm:$0xff]
    %v52 = vld [vmem:[#allocation2 + $0x8] sm:$0xff]
    %v53 = vld [vmem:[#allocation3] sm:$0xf]
    %v54 = vld [vmem:[#allocation3 + $0x4] sm:$0xf]
    %v55 = vld [vmem:[#allocation6] sm:$0xf]
    %v56 = vld [vmem:[#allocation6 + $0x4] sm:$0xf]
    %v57 = vld [vmem:[#allocation6 + $0x8] sm:$0xf]
    %v58 = vld [vmem:[#allocation6 + $0xc] sm:$0xf]
    %v61 = vunpack.c.l.b16 %v53
    %v62 = vunpack.c.l.b16 %v54
    %v63 = vpack.c.b16 %v62, %v61
    %v68 = vunpack.c.l.b16 %v55
    %v69 = vunpack.c.l.b16 %v56
    %v70 = vunpack.c.l.b16 %v57
    %v71 = vunpack.c.l.b16 %v58
    %v72 = vpack.c.b16 %v69, %v68
    %v73 = vpack.c.b16 %v71, %v70
    %vm76 = vcmask 261120
    %v78 = vsel %vm76, %v63, 0
    %80 = vmatprep.subr.bf16.mxu0 0
    %81 = vmatpush1.bf16.msra.mxu0 %v72
    %82 = vmatprep.subr.bf16.mxu0 0
    %83 = vmatpush1.bf16.msra.mxu0 %v73
    %84 = vmatprep.subr.bf16.mxu0 0
    %85 = vmatpush1.bf16.msra.mxu0 0
    %86 = vmatprep.subr.bf16.mxu0 0
    %87 = vmatpush1.bf16.msra.mxu0 0
    %88 = vmatprep.subr.bf16.mxu0 0
    %89 = vmatpush1.bf16.msra.mxu0 0
    %90 = vmatprep.subr.bf16.mxu0 0
    %91 = vmatpush1.bf16.msra.mxu0 0
    %92 = vmatprep.subr.bf16.mxu0 0
    %93 = vmatpush1.bf16.msra.mxu0 0
    %94 = vmatprep.subr.bf16.mxu0 0
    %95 = vmatpush1.bf16.msra.mxu0 0
    %96 = vmatprep.subr.bf16.mxu0 0
    %97 = vmatpush1.bf16.msra.mxu0 0
    %98 = vmatprep.subr.bf16.mxu0 0
    %99 = vmatpush1.bf16.msra.mxu0 0
    %100 = vmatprep.subr.bf16.mxu0 0
    %101 = vmatpush1.bf16.msra.mxu0 0
    %102 = vmatprep.subr.bf16.mxu0 0
    %103 = vmatpush1.bf16.msra.mxu0 0
    %104 = vmatprep.subr.bf16.mxu0 0
    %105 = vmatpush1.bf16.msra.mxu0 0
    %106 = vmatprep.subr.bf16.mxu0 0
    %107 = vmatpush1.bf16.msra.mxu0 0
    %108 = vmatprep.subr.bf16.mxu0 0
    %109 = vmatpush1.bf16.msra.mxu0 0
    %110 = vmatprep.subr.bf16.mxu0 0
    %111 = vmatpush1.bf16.msra.mxu0 0
    %112 = vmatprep.mubr.bf16.mxu0 0
    %113 = vmatmul.mubr.bf16.gmra.mrb[0].mxu0 %v78
    %v114 = vpop.f32.mrb[0].mxu0
    %v115 = vadd.f32 0.0, %v114
    %v116 = vpop.f32.mrb[0].mxu0
    %v117 = vpop.f32.mrb[0].mxu0
    %v118 = vadd.f32 0.0, %v117
    %v119 = vpop.f32.mrb[0].mxu0
    %120 = vdwg.mxu0
    %v121 = vadd.f32 %v51, %v115
    %v122 = vadd.f32 %v52, %v118
    %vm123 = vcmask 785408
    %124 = vst.msk [vmem:[#allocation2] sm:$0xff] %vm123, %v121
    %125 = vst.msk [vmem:[#allocation2 + $0x8] sm:$0xff] %vm123, %v122
    // Predicated region
    $region26: #{tpu_custom_call.1} parent=1 // pred_check
      %p126 = pneg %p44
    $region27: #{tpu_custom_call.1} parent=1 // pred_check_branch
      %128 = sbr.rel (%p126) target = $region29
    $region28: #{tpu_custom_call.1} parent=1 // pred_region
      %v129 = vld [vmem:[#allocation2] sm:$0xff]
      %v130 = vld [vmem:[#allocation2 + $0x8] sm:$0xff]
      %v131 = vld [vmem:[%s2] sm:$0x1]
      %v133 = vlaneseq
      %v134 = vshrl.u32 %v133, 7
      %v135 = vsub.s32 0, %v134
      %v136 = vrot.slane %v131, %v135
      %v138 = vadd.f32 %v129, %v136
      %v139 = vadd.f32 %v130, %v136
      %v140 = vpack.c.bf16 %v139, %v138
      %v142 = vunpack.c.l.b16 %v140
      %v143 = vunpack.c.h.b16 %v140
      %v144 = vpack.c.b16 %v142, %v142
      %v145 = vpack.c.b16 %v143, %v143
      %vm148 = vcmask 781312
      %149 = vst.msk [vmem:[#allocation8] sm:$0xf] %vm148, %v144
      %150 = vst.msk [vmem:[#allocation8 + $0x4] sm:$0xf] %vm148, %v145
    $region29: #{tpu_custom_call.1} parent=1 // pred_fallthru
      _
    // Predicated region
    $region30: #{tpu_custom_call.1} parent=1 // pred_check
      _
    $region31: #{tpu_custom_call.1} parent=1 // pred_check_branch
      %152 = sbr.rel (0) target = $region33
    $region32: #{tpu_custom_call.1} parent=1 // pred_region
      %s154 = ssub.s32 128, 128
      %155 = vsyncadd [#allocation5], %s154
      %s156 = sshll.u32 [#allocation8], 4
      %s157 = int_to_ptr.vmem [resolvable:$true] %s156
      %162 = dma.vmem_to_hbm [thread:$0]  %s157, 128, %s3, [#allocation5], 64, 64, 4
    $region33: #{tpu_custom_call.1} parent=1 // pred_fallthru
      _
    // Predicated region
    $region34: #{tpu_custom_call.1} parent=1 // pred_check
      _
    $region35: #{tpu_custom_call.1} parent=1 // pred_check_branch
      %164 = sbr.rel (0) target = $region37
    $region36: #{tpu_custom_call.1} parent=1 // pred_region
      %165 = dma.done [#allocation5], 128
    $region37: #{tpu_custom_call.1} parent=1 // pred_fallthru
      _
    %166 = vsyncpa [#allocation4], 1
    %167 = vsyncpa [#allocation7], 1
    %168 = vsyncpa [#allocation5], 1

</llo_original>
